<compile_context>
chip_gen: v7x
topology: tpu7x:2x2x1
jax: 0.10.0
libtpu: 0.0.40
codegen_flags: <defaults>
</compile_context>

<pallas_src>
import functools

import numpy as np
import jax
import jax.numpy as jnp
from jax import lax
from jax.experimental import pallas as pl
from jax.experimental.pallas import tpu as pltpu


# --------------------- small constant spatial operators ------------------------

def _stride_select_mats(H, W, s):
    """S[t] (L,Lo): (x2d @ S[t])[c, h'*Wo+w'] == x2d[c, (s*h'+i)*W + (s*w'+j)]
    for tap t = i*s + j — the samples of an sxs, stride-s (un-padded) conv."""
    Ho, Wo = H // s, W // s
    L, Lo = H * W, Ho * Wo
    ho = np.arange(Ho)[:, None]
    wo = np.arange(Wo)[None, :]
    l_dst = (ho * Wo + wo).reshape(-1)
    S = np.zeros((s * s, L, Lo), np.float32)
    for i in range(s):
        for j in range(s):
            l_src = ((s * ho + i) * W + (s * wo + j)).reshape(-1)
            S[i * s + j, l_src, l_dst] = 1.0
    return S


def _upsample_mat(Ho, Wo, s):
    """U (Lo,L): (x2d @ U)[c, h*W+w] == x2d[c, (h//s)*Wo + (w//s)] (nearest x s)."""
    H, W = Ho * s, Wo * s
    h = np.arange(H)[:, None]
    w = np.arange(W)[None, :]
    l_dst = (h * W + w).reshape(-1)
    l_src = ((h // s) * Wo + (w // s)).reshape(-1)
    U = np.zeros((Ho * Wo, H * W), np.float32)
    U[l_src, l_dst] = 1.0
    return U


# ------------------------------ shared math helpers -----------------------------

def _elu(y):
    return jnp.where(y > 0.0, y, jnp.exp(jnp.minimum(y, 0.0)) - 1.0)


def _sigmoid(y):
    return 1.0 / (1.0 + jnp.exp(-y))


def _layer_norm(y, axes):
    # matches the module's LayerNorm: unbiased variance (n-1), eps=1e-5, no affine
    n = 1
    for a in axes:
        n *= y.shape[a]
    mu = jnp.mean(y, axis=axes, keepdims=True)
    d = y - mu
    var = jnp.sum(d * d, axis=axes, keepdims=True) * (1.0 / (n - 1))
    return d * lax.rsqrt(var + 1e-5)


def time_embed(k, temporal):
    # TODO(synk): TimeEmb is not defined in the provided source; using a
    # sinusoidal embedding with `temporal` channels.  It is spatially constant,
    # so it folds exactly into the first-conv bias of every down layer.
    kcol = k.reshape(-1, 1).astype(jnp.float32)
    i = jnp.arange(temporal, dtype=jnp.float32)
    freq = jnp.exp(-jnp.log(10000.0) * (2.0 * (i // 2)) / float(temporal))
    ang = kcol * freq
    return jnp.where((i % 2) == 0, jnp.sin(ang), jnp.cos(ang))       # (N, temporal)


# ------------------------------ parameter packing -------------------------------

def _pack_taps(w):
    """(Co, Ci, kh, kw) -> (Co, kh*kw*Ci): column (i*kw+j)*Ci + ci."""
    w = np.asarray(w, np.float32)
    co, ci, kh, kw = w.shape
    return np.transpose(w, (0, 2, 3, 1)).reshape(co, kh * kw * ci)


def _pack_1x1(w):
    w = np.asarray(w, np.float32)
    return w[:, :, 0, 0]


class _SlabPacker:
    """Packs 2-D weights into one (rows, total) slab with 128-aligned columns."""

    def __init__(self, rows):
        self.rows = rows
        self.cols = 0
        self.blocks = []

    def add(self, w2d):
        co, kk = w2d.shape
        off = self.cols
        self.blocks.append((off, w2d))
        self.cols += ((kk + 127) // 128) * 128
        return (int(co), int(off), int(kk))

    def finalize(self):
        slab = np.zeros((self.rows, max(self.cols, 128)), np.float32)
        for off, w in self.blocks:
            slab[: w.shape[0], off: off + w.shape[1]] = w
        return slab


def pack_inputs(params, cfg):
    depth, temporal = cfg["depth"], cfg["temporal"]

    all_convs = []
    for convs in params["down"] + params["up"]:
        all_convs += convs
    all_convs += params["pool"] + params["reduce"] + [params["tail"]]
    for a in params["att"]:
        all_convs += [a["scale"], a["combine"]]
    rows = int(-(-max(c[0].shape[0] for c in all_convs) // 8) * 8)

    packer = _SlabPacker(rows)
    bias_list = []

    def add_bias(b):
        b = np.asarray(b, np.float32)
        bias_list.append(b)
        return (int(b.shape[0]), len(bias_list) - 1)

    wmeta = dict(down=[], up=[], pool=[], reduce=[], att_scale=[], att_combine=[])
    bmeta = dict(down=[], up=[], pool=[], reduce=[], att_scale=[], att_combine=[])
    kfold = []

    for convs in params["down"]:
        w0, b0 = convs[0]
        cin_x = w0.shape[1] - temporal
        ws = [packer.add(_pack_taps(w0[:, :cin_x]))]
        bs = []
        # fold the spatially-constant k_emb part exactly into a per-batch bias
        wk = jnp.asarray(w0[:, cin_x:], jnp.bfloat16).astype(jnp.float32)
        kfold.append((jnp.sum(wk, axis=(2, 3)), jnp.asarray(b0, jnp.float32)))
        for (w, b) in convs[1:]:
            ws.append(packer.add(_pack_taps(w)))
            bs.append(add_bias(b))
        wmeta["down"].append(ws)
        bmeta["down"].append(bs)

    for (w, b) in params["pool"]:
        wmeta["pool"].append(packer.add(_pack_taps(w)))
        bmeta["pool"].append(add_bias(b))

    for a in params["att"]:
        sw, sb = a["scale"]
        cw, cb = a["combine"]
        wmeta["att_scale"].append(packer.add(_pack_taps(sw)))
        bmeta["att_scale"].append(add_bias(sb))
        wmeta["att_combine"].append(packer.add(_pack_1x1(cw)))
        bmeta["att_combine"].append(add_bias(cb))

    for (w, b) in params["reduce"]:
        wmeta["reduce"].append(packer.add(_pack_1x1(w)))
        bmeta["reduce"].append(add_bias(b))

    for convs in params["up"]:
        ws, bs = [], []
        for (w, b) in convs:
            ws.append(packer.add(_pack_taps(w)))
            bs.append(add_bias(b))
        wmeta["up"].append(ws)
        bmeta["up"].append(bs)

    tw, tb = params["tail"]
    wmeta["tail"] = packer.add(_pack_1x1(tw))
    bmeta["tail"] = add_bias(tb)

    wslab = jnp.asarray(packer.finalize(), jnp.bfloat16)
    bslab_np = np.zeros((rows, len(bias_list)), np.float32)
    for idx, b in enumerate(bias_list):
        bslab_np[: b.shape[0], idx] = b
    return dict(wslab=wslab, bslab=jnp.asarray(bslab_np), wmeta=wmeta, bmeta=bmeta,
                kfold=kfold, rows=rows)


# ------------------------- pltpu.roll convention probe ---------------------------

def detect_roll_convention():
    """Returns True if pltpu.roll matches np.roll (y[l] = x[(l-shift) % L])."""
    def probe(x_ref, o_ref):
        o_ref[...] = pltpu.roll(x_ref[...], shift=1, axis=1)

    x = jnp.tile(jnp.arange(128, dtype=jnp.float32)[None, :], (8, 1))
    y = pl.pallas_call(
        probe, out_shape=jax.ShapeDtypeStruct((8, 128), jnp.float32))(x)
    v = float(y[0, 0])
    if v == 127.0:
        return True
    if v == 1.0:
        return False
    raise RuntimeError(f"unexpected pltpu.roll convention (probe value {v})")


# --------------------------------- fused forward ---------------------------------

def score_att_unet(x, k, *, packed, cfg, roll_matches_numpy):
    depth, temporal = cfg["depth"], cfg["temporal"]
    ss, ks, output_c = cfg["spatial_scale"], cfg["ks"], cfg["output_c"]
    wmeta, bmeta, rows = packed["wmeta"], packed["bmeta"], packed["rows"]

    N, cin0, H0, W0 = x.shape
    Hs = [H0 // ss ** i for i in range(depth)]
    Ws_ = [W0 // ss ** i for i in range(depth)]
    Ls = [Hs[i] * Ws_[i] for i in range(depth)]
    for w in Ws_:
        assert w & (w - 1) == 0, "row width must be a power of two for lane masks"

    # ---- per-batch effective biases of every down layer's first conv --------
    emb = time_embed(k, temporal)
    emb_b = emb.astype(jnp.bfloat16).astype(jnp.float32)
    beff = jnp.zeros((N, rows, depth), jnp.float32)
    for i, (wk_sum, b0) in enumerate(packed["kfold"]):
        co = b0.shape[0]
        beff = beff.at[:, :co, i].set(b0[None, :] + emb_b @ wk_sum.T)

    x3 = x.reshape(N, cin0, Ls[0]).astype(jnp.float32)

    S_list = [jnp.asarray(_stride_select_mats(Hs[i], Ws_[i], ss), jnp.bfloat16)
              for i in range(depth - 1)]
    U_list = [jnp.asarray(_upsample_mat(Hs[i + 1], Ws_[i + 1], ss), jnp.bfloat16)
              for i in range(depth - 1)]

    inputs = [x3, beff] + S_list + U_list + [packed["wslab"], packed["bslab"]]

    def const_spec(shape):
        nd = len(shape)
        return pl.BlockSpec(shape, lambda n, _nd=nd: (0,) * _nd)

    specs = ([pl.BlockSpec((1, cin0, Ls[0]), lambda n: (n, 0, 0)),
              pl.BlockSpec((1, rows, depth), lambda n: (n, 0, 0))]
             + [const_spec(s.shape) for s in S_list]
             + [const_spec(u.shape) for u in U_list]
             + [const_spec(packed["wslab"].shape),
                const_spec(packed["bslab"].shape)])

    nS = depth - 1
    p = (ks - 1) // 2

    # -------------------------------- kernel --------------------------------
    def kernel(*refs):
        x_ref, beff_ref = refs[0], refs[1]
        s_refs = refs[2: 2 + nS]
        u_refs = refs[2 + nS: 2 + 2 * nS]
        w_ref, b_ref, o_ref = refs[2 + 2 * nS], refs[3 + 2 * nS], refs[4 + 2 * nS]
        bf16, f32 = jnp.bfloat16, jnp.float32

        def wget(m):
            co, off, kk = m
            return w_ref[0:co, off:off + kk]                 # bf16 (co, kk)

        def bget(m):
            co, idx = m
            return b_ref[0:co, idx:idx + 1]                  # f32 (co, 1)

        def dotf(a, b):
            return jnp.dot(a, b, preferred_element_type=f32)

        def gshift(t, s):
            """y[.., l] = t[.., (l + s) % L]  (s static)."""
            L = t.shape[-1]
            s %= L
            if s == 0:
                return t
            amt = (L - s) if roll_matches_numpy else s
            return pltpu.roll(t, shift=amt, axis=1)

        mask_cache = {}

        def col_mask(L, W, lo, hi):
            key = (L, W, lo, hi)
            if key not in mask_cache:
                col = lax.broadcasted_iota(jnp.int32, (1, L), 1) & (W - 1)
                mask_cache[key] = jnp.logical_and(col >= lo, col < hi)
            return mask_cache[key]

        def col_shift(t, dw, W):
            """circular shift within rows of width W: y[c,hW+w]=t[c,hW+(w+dw)%W]."""
            if dw == 0:
                return t
            L = t.shape[-1]
            main = gshift(t, dw)
            if dw > 0:
                return jnp.where(col_mask(L, W, W - dw, W), gshift(t, dw - W), main)
            return jnp.where(col_mask(L, W, 0, -dw), gshift(t, dw + W), main)

        def conv_circ(x2d, wm, bias_col, W):
            """circular ks x ks conv of (Ci, L) -> (Co, L), one K-stacked matmul."""
            ci, L = x2d.shape
            cols = {dw: col_shift(x2d, dw, W) for dw in range(-p, p + 1)}
            taps = [gshift(cols[j - p], (i - p) * W)
                    for i in range(ks) for j in range(ks)]
            co = wm[0]
            if ci == 1:
                # degenerate input-channel=1 conv: cheaper as a VPU broadcast-MAC
                wq = wget(wm).astype(f32)                    # (co, ks*ks)
                acc = None
                for t in range(ks * ks):
                    term = wq[:, t:t + 1] * taps[t].astype(bf16).astype(f32)
                    acc = term if acc is None else acc + term
                return acc + bias_col
            stacked = jnp.concatenate(taps, axis=0).astype(bf16)   # (ks²·ci, L)
            return dotf(wget(wm), stacked) + bias_col

        def down_up(x2d, wms, bias_cols, W):
            h = _elu(conv_circ(x2d, wms[0], bias_cols[0], W))
            for wm, bc in zip(wms[1:], bias_cols[1:]):
                h = _elu(h + conv_circ(_layer_norm(h, (1,)), wm, bc, W))
            return h

        # ------------------------------ down path ------------------------------
        h = x_ref[0].astype(f32)                             # (cin0, L0)
        skips = []
        for i in range(depth):
            co0 = wmeta["down"][i][0][0]
            b_cols = ([beff_ref[0, 0:co0, i:i + 1]]
                      + [bget(m) for m in bmeta["down"][i]])
            h = down_up(h, wmeta["down"][i], b_cols, Ws_[i])
            if i < depth - 1:
                # stride-ss selection of the skip, computed once and shared by the
                # pool conv (now) and the attention scale_dpath conv (up path).
                hb = h.astype(bf16)
                sel = jnp.concatenate(
                    [dotf(hb, s_refs[i][t]) for t in range(ss * ss)], axis=0
                ).astype(bf16)                                # (ss²·C_i, L_{i+1})
                skips.append((h, sel))
                h = dotf(wget(wmeta["pool"][i]), sel) + bget(bmeta["pool"][i])

        # ------------------------------- up path -------------------------------
        for i in range(depth - 1):
            h = dotf(wget(wmeta["reduce"][i]), h.astype(bf16)) + bget(bmeta["reduce"][i])
            j = depth - 2 - i
            skip, sel = skips[j]
            C = skip.shape[0]
            # AttentionSkip: combine (1x1) & sigmoid commute with nearest upsample,
            # so the gate is computed at low resolution, then upsampled.
            watt = _elu(h + dotf(wget(wmeta["att_scale"][j]), sel)
                        + bget(bmeta["att_scale"][j]))
            gate = _sigmoid(dotf(wget(wmeta["att_combine"][j]), watt.astype(bf16))
                            + bget(bmeta["att_combine"][j]))
            # fused nearest-upsample of [gate ; h] with ONE matmul
            both = jnp.concatenate([gate, h], axis=0).astype(bf16)   # (2C, L_{j+1})
            ups = dotf(both, u_refs[j][...])                          # (2C, L_j)
            att_out = skip * ups[0:C]
            x_cat = jnp.concatenate([att_out, ups[C:2 * C]], axis=0)  # (2C, L_j)
            b_cols = [bget(m) for m in bmeta["up"][i]]
            h = down_up(x_cat, wmeta["up"][i], b_cols, Ws_[j])

        # --------------------------------- head ---------------------------------
        h = (dotf(wget(wmeta["reduce"][depth - 1]), h.astype(bf16))
             + bget(bmeta["reduce"][depth - 1]))
        h = dotf(wget(wmeta["tail"]), h.astype(bf16)) + bget(bmeta["tail"])
        o_ref[0] = h.astype(o_ref.dtype)

    out = pl.pallas_call(
        kernel,
        out_shape=jax.ShapeDtypeStruct((N, output_c, Ls[0]), jnp.float32),
        grid=(N,),
        in_specs=specs,
        out_specs=pl.BlockSpec((1, output_c, Ls[0]), lambda n: (n, 0, 0)),
        compiler_params=pltpu.CompilerParams(dimension_semantics=("parallel",)),
    )(*inputs)
    return out.reshape(N, output_c, H0, W0)


# ------------------------------ pure-JAX reference --------------------------------

def reference_forward(x, k, params, cfg):
    depth, temporal, ss, ks = (cfg["depth"], cfg["temporal"],
                               cfg["spatial_scale"], cfg["ks"])
    p = (ks - 1) // 2
    emb = time_embed(k, temporal)

    def conv(h, w, b, stride=1, circular=False):
        if circular:
            h = jnp.pad(h, ((0, 0), (0, 0), (p, p), (p, p)), mode="wrap")
        y = lax.conv_general_dilated(
            h.astype(jnp.bfloat16), jnp.asarray(w, jnp.bfloat16),
            window_strides=(stride, stride), padding="VALID",
            dimension_numbers=("NCHW", "OIHW", "NCHW"),
            preferred_element_type=jnp.float32)
        return y + jnp.asarray(b, jnp.float32).reshape(1, -1, 1, 1)

    def kmap(h):
        n, _, hh, ww = h.shape
        return jnp.broadcast_to(emb[:, :, None, None], (n, temporal, hh, ww))

    def dul(h, convs):
        w0, b0 = convs[0]
        h = _elu(conv(h, w0, b0, circular=True))
        for (w, b) in convs[1:]:
            h = _elu(h + conv(_layer_norm(h, (2, 3)), w, b, circular=True))
        return h

    def upsample(h):
        return jnp.repeat(jnp.repeat(h, ss, axis=2), ss, axis=3)

    skips = []
    h = x
    for i in range(depth - 1):
        h = dul(jnp.concatenate([h, kmap(h)], axis=1), params["down"][i])
        skips.append(h)
        wp_, bp_ = params["pool"][i]
        h = conv(h, wp_, bp_, stride=ss)
    h = dul(jnp.concatenate([h, kmap(h)], axis=1), params["down"][depth - 1])

    for i in range(depth - 1):
        wr, br = params["reduce"][i]
        h = conv(h, wr, br)
        j = depth - 2 - i
        a = params["att"][j]
        sw, sb = a["scale"]
        cw, cb = a["combine"]
        watt = _elu(h + conv(skips[j], sw, sb, stride=ss))
        watt = conv(upsample(watt), cw, cb)
        att_out = skips[j] * _sigmoid(watt)
        h = dul(jnp.concatenate([att_out, upsample(h)], axis=1), params["up"][i])

    wr, br = params["reduce"][depth - 1]
    h = conv(h, wr, br)
    tw, tb = params["tail"]
    return conv(h, tw, tb)


# ------------------------------ parameter creation --------------------------------

def _init_conv(key, cout, cin, kh, kw):
    k1, k2 = jax.random.split(key)
    bound = 1.0 / jnp.sqrt(float(cin * kh * kw))
    w = jax.random.uniform(k1, (cout, cin, kh, kw), jnp.float32, -bound, bound)
    b = jax.random.uniform(k2, (cout,), jnp.float32, -bound, bound)
    return w, b


def build_params(key, input_c, output_c, depth, input_hidden, spatial_scale,
                 n_c, ks, temporal):
    keys = iter(jax.random.split(key, 512))

    def conv_p(cout, cin, kh, kw):
        return _init_conv(next(keys), cout, cin, kh, kw)

    def dul_p(cin, cout):
        ps = [conv_p(cout, cin, ks, ks)]
        for _ in range(n_c - 1):
            ps.append(conv_p(cout, cout, ks, ks))
        return ps

    ic = input_c + temporal
    down = [dul_p(ic, input_hidden)]
    att, pool = [], []
    for i in range(depth - 1):
        c = input_hidden * spatial_scale ** i
        att.append(dict(scale=conv_p(c, c, spatial_scale, spatial_scale),
                        combine=conv_p(c, c, 1, 1)))
        down.append(dul_p(c + temporal, input_hidden * spatial_scale ** (i + 1)))
        pool.append(conv_p(c, c, spatial_scale, spatial_scale))
    nextC = input_hidden * spatial_scale ** (depth - 1)
    reduce_ = [conv_p(nextC // spatial_scale ** (i + 1), nextC // spatial_scale ** i, 1, 1)
               for i in range(depth)]
    up = [dul_p(nextC // spatial_scale ** i, nextC // spatial_scale ** (i + 1))
          for i in range(depth - 1)]
    outC = nextC // spatial_scale ** depth
    tail = conv_p(output_c, outC, 1, 1)
    return dict(down=down, att=att, pool=pool, reduce=reduce_, up=up, tail=tail)


# ------------------------------------ main -----------------------------------------

if __name__ == "__main__":
    cfg = dict(input_c=1, output_c=1, depth=2, input_hidden=8, spatial_scale=2,
               n_c=2, ks=3, temporal=4)

    root = jax.random.PRNGKey(0)
    kp, kx = jax.random.split(root, 2)
    params = build_params(kp, **cfg)

    x = jax.random.normal(kx, (2, 1, 16, 16), jnp.float32)      # NCHW
    kt = jnp.array([1.0, 3.0], jnp.float32)                     # per-batch time index

    roll_np = detect_roll_convention()
    packed = pack_inputs(params, cfg)

    fwd = jax.jit(functools.partial(score_att_unet, packed=packed, cfg=cfg,
                                    roll_matches_numpy=roll_np))
    out = jax.block_until_ready(fwd(x, kt))

    assert out.shape == (2, cfg["output_c"], 16, 16), out.shape
    assert bool(jnp.all(jnp.isfinite(out)))

    ref = jax.jit(functools.partial(reference_forward, params=params, cfg=cfg))(x, kt)
    ref = jax.block_until_ready(ref)
    err = float(jnp.max(jnp.abs(out - ref)))
    scale = float(jnp.max(jnp.abs(ref)))
    assert err <= 5e-2 * max(1.0, scale), f"mismatch: max|diff|={err}, max|ref|={scale}"

    print("KERNEL_OK")
</pallas_src>

<mosaic_0001>
module attributes {stable_mosaic.version = 11 : i64} {
  func.func @probe(%arg0: memref<8x128xf32, #tpu.memory_space<vmem>>, %arg1: memref<8x128xf32, #tpu.memory_space<vmem>>) attributes {dimension_semantics = [], scalar_prefetch = 0 : i64, scratch_operands = 0 : i64, tpu.core_type = #tpu.core_type<tc>} {
    %c0 = arith.constant 0 : index
    %c0_0 = arith.constant 0 : index
    %0 = vector.load %arg0[%c0, %c0_0] : memref<8x128xf32, #tpu.memory_space<vmem>>, vector<8x128xf32>
    %c1_i32 = arith.constant 1 : i32
    %1 = tpu.dynamic_rotate %0 by %c1_i32 dim 1 : vector<8x128xf32>, i32 -> vector<8x128xf32>
    %c0_1 = arith.constant 0 : index
    %c0_2 = arith.constant 0 : index
    %2 = vector.load %arg1[%c0_1, %c0_2] : memref<8x128xf32, #tpu.memory_space<vmem>>, vector<8x128xf32>
    tpu.vector_store %arg1[%c0_1, %c0_2], %1 {strides = array<i32>} : memref<8x128xf32, #tpu.memory_space<vmem>>, vector<8x128xf32>,
    return
  }
}

</mosaic_0001>

<llo_original>
// kernel: tpu_custom_call.1
$region0: #{tpu_custom_call.1}
  #allocation0 [shape = 'u32[]', space=smem, size = 0x4, offset = 0x4, fixed_abs, tag = 'smem constant byte address 0x4 - core index']
  #allocation1 [shape = 'u32[144,128]{1,0:T(1,128)}', space=vmem, size = 0x12000, scoped, tag = 'internal scratch']
  %s0 = inlined_call_operand.hbm [shape: f32[8,128], index: 0, kind: input, shape index: {}]
  %s1 = inlined_call_operand.hbm [shape: f32[8,128], index: 1, kind: output, shape index: {}]
  %s2 = sld [smem:[#allocation0]]
  $region18: #{tpu_custom_call.1} parent=0
    _
  %s4 = ssub.s32 1, %s2
  %s5 = scalar_select 0, %s4, %s2
  $region1: #{tpu_custom_call.1} parent=0
    #allocation2 [shape = 'u8[4096]{0}', space=vmem, size = 0x1000, scoped, tag = 'input window, operand 0, single buffered']
    #allocation3 [shape = 's32[1]{0}', space=sflag, size = 0x4, scoped, tag = 'scoped memory for tpu_custom_call.1']
    #allocation4 [shape = 's32[1]{0}', space=sflag, size = 0x4, scoped, tag = 'scoped memory for tpu_custom_call.1']
    #allocation5 [shape = 'u8[4096]{0}', space=vmem, size = 0x1000, scoped, tag = 'output window, operand 0, single buffered']
    %6 = vsyncpa [#allocation3], 0
    %7 = vsyncpa [#allocation4], 0
    // Predicated region
    $region2: #{tpu_custom_call.1} parent=1 // pred_check
      _
    $region3: #{tpu_custom_call.1} parent=1 // pred_check_branch
      %9 = sbr.rel (0) target = $region5
    $region4: #{tpu_custom_call.1} parent=1 // pred_region
      %s11 = ssub.s32 128, 128
      %12 = vsyncadd [#allocation3], %s11
      %s14 = sshll.u32 [#allocation2], 4
      %s15 = int_to_ptr.vmem [resolvable:$true] %s14
      %17 = dma.hbm_to_vmem [thread:$0]  %s0, 128, %s15, [#allocation3]
    $region5: #{tpu_custom_call.1} parent=1 // pred_fallthru
      _
    // Predicated region
    $region6: #{tpu_custom_call.1} parent=1 // pred_check
      _
    $region7: #{tpu_custom_call.1} parent=1 // pred_check_branch
      %19 = sbr.rel (0) target = $region9
    $region8: #{tpu_custom_call.1} parent=1 // pred_region
      %20 = dma.done [#allocation3], 128
    $region9: #{tpu_custom_call.1} parent=1 // pred_fallthru
      _
    %v21 = vld [vmem:[#allocation2] sm:$0xff]
    %22 = vrot.lane.b32.xlu0 %v21, 1
    %v23 = vpop.permute.xlu0 %22
    %24 = vst [vmem:[#allocation5] sm:$0xff] %v23
    // Predicated region
    $region10: #{tpu_custom_call.1} parent=1 // pred_check
      _
    $region11: #{tpu_custom_call.1} parent=1 // pred_check_branch
      %26 = sbr.rel (0) target = $region13
    $region12: #{tpu_custom_call.1} parent=1 // pred_region
      %s28 = ssub.s32 128, 128
      %29 = vsyncadd [#allocation4], %s28
      %s31 = sshll.u32 [#allocation5], 4
      %s32 = int_to_ptr.vmem [resolvable:$true] %s31
      %34 = dma.vmem_to_hbm [thread:$0]  %s32, 128, %s1, [#allocation4]
    $region13: #{tpu_custom_call.1} parent=1 // pred_fallthru
      _
    // Predicated region
    $region14: #{tpu_custom_call.1} parent=1 // pred_check
      _
    $region15: #{tpu_custom_call.1} parent=1 // pred_check_branch
      %36 = sbr.rel (0) target = $region17
    $region16: #{tpu_custom_call.1} parent=1 // pred_region
      %37 = dma.done [#allocation4], 128
    $region17: #{tpu_custom_call.1} parent=1 // pred_fallthru
      _
    %38 = vsyncpa [#allocation3], 1
    %39 = vsyncpa [#allocation4], 1

</llo_original>
